<compile_context>
chip_gen: v6e
topology: v6e:2x2x1
jax: 0.10.0
libtpu: 0.0.40
codegen_flags: <defaults>
</compile_context>

<pallas_src>
import math

import jax
import jax.numpy as jnp
from jax.experimental import pallas as pl
from jax.experimental.pallas import tpu as pltpu


def _sublane_packing(dtype) -> int:
    """Rows per (sublane, lane) vreg tile for `dtype` (8 f32, 16 bf16, 32 int8)."""
    return max(8, 32 // jnp.dtype(dtype).itemsize)


def attentive_reducer_kernel(q_ref, x_ref, mask_ref, gamma_ref, beta_ref, o_ref):
    # q_ref:    (1, H)      fc.weight (attention query)
    # x_ref:    (TB, S, H)  token embeddings for this batch tile (keys == values)
    # mask_ref: (TB, S)     int mask, 0 -> masked out
    # gamma_ref/beta_ref: (1, H) LayerNorm affine params
    # o_ref:    (TB, H)     reduced output tile
    TB, S, H = x_ref.shape

    x = x_ref[...]                                      # native dtype, no f32 blow-up
    mask = mask_ref[...]                                # (TB, S)

    # Fold 1/sqrt(H) into the (1, H) query once.
    q = q_ref[...].astype(jnp.float32) * jnp.float32(1.0 / math.sqrt(H))

    # ---- attention scores -> dense (TB, S), f32 accumulation -------------------
    if S % _sublane_packing(x.dtype) == 0:
        # x is the LHS of a plain 2-D MXU matmul in its natural (.., K=H)
        # orientation; q^T is a tiny (H, 1) RHS loaded once.  No transpose or
        # per-batch weight reload of the big tile, no q broadcast.
        s = jnp.dot(x.reshape(TB * S, H), q.astype(x.dtype).reshape(H, 1),
                    preferred_element_type=jnp.float32).reshape(TB, S)
    else:
        # S not sublane-aligned: the (TB*S, H) view would relayout the whole x
        # tile, so use the batched NT (q @ x^T) matmul; q broadcast is only
        # (TB, 1, H).
        q_b = jnp.broadcast_to(q.astype(x.dtype).reshape(1, 1, H), (TB, 1, H))
        s = jnp.einsum('bqh,bkh->bqk', q_b, x,
                       preferred_element_type=jnp.float32).reshape(TB, S)

    # ---- dense masked softmax over the sequence axis ----------------------------
    s = jnp.where(mask == 0, jnp.float32(-1e9), s)
    m = jnp.max(s, axis=-1, keepdims=True)
    e = jnp.exp(s - m)
    # Approx (EUP) reciprocal: its per-row scale error cancels in LayerNorm below.
    p = e * pl.reciprocal(jnp.sum(e, axis=-1, keepdims=True), approx=True)   # (TB, S)

    # ---- attention-weighted reduction over S (x is the natural, untransposed RHS)
    att = jnp.einsum('bqk,bkh->bqh', p[:, None, :].astype(x.dtype), x,
                     preferred_element_type=jnp.float32).reshape(TB, H)      # f32

    # ---- torch-style LayerNorm: two-pass stats, unbiased (H-1) var, /(std+eps) --
    mean = jnp.sum(att, axis=-1, keepdims=True) * jnp.float32(1.0 / H)
    diff = att - mean
    var = jnp.sum(diff * diff, axis=-1, keepdims=True) * jnp.float32(1.0 / (H - 1))
    inv = jnp.float32(1.0) / (jnp.sqrt(var) + jnp.float32(1e-6))   # exact reciprocal
    out = (gamma_ref[...].astype(jnp.float32) * (diff * inv)
           + beta_ref[...].astype(jnp.float32))

    # nn.Dropout is identity in eval mode (forward pass only).
    o_ref[...] = out.astype(o_ref.dtype)


def _x_buffer_budget_bytes() -> int:
    """Per-pipeline-buffer byte budget for the x tile, by TPU generation."""
    try:
        kind = jax.devices()[0].device_kind.lower()
    except Exception:
        return 8 << 20
    if "v5 lite" in kind or "v5e" in kind or "v5lite" in kind:
        return 5 << 20          # 16 MiB scoped default, slow HBM -> small tiles
    if "v6" in kind:
        return 12 << 20         # 128 MiB physical VMEM -> amortize per-step overhead
    return 8 << 20              # v7x (64 MiB VMEM, 3.2 TB/s HBM) and unknown


def _pick_block_b(B, S, H, x_itemsize, align, budget) -> int:
    per_row = max(S * H * x_itemsize, 1)
    tb = max(1, budget // per_row)
    # Keep >= 2 grid steps whenever alignment allows: feeds v7x's 2 TensorCores
    # and keeps the x DMA software-pipelined even when the whole batch fits.
    if B >= 2 * align:
        tb = min(tb, pl.cdiv(B, 2))
    tb = min(tb, B)
    if tb < B:
        tb = min(B, max(align, (tb // align) * align))   # sublane packing
    return int(tb)


def attentive_reducer(batch_token_emb, masks, fc_weight, gamma, beta, *,
                      block_b=None, compute_dtype=None):
    """Pallas AttentiveReducer forward.

    batch_token_emb: (B, S, H); masks: (B, S) int (0 = padding) or None;
    fc_weight/gamma/beta: (1, H).  Returns (B, H).
    compute_dtype: optionally run the x DMA + both contractions in e.g. bf16
    (f32 accumulation is kept either way).
    """
    B, S, H = batch_token_emb.shape
    out_dtype = batch_token_emb.dtype
    x = batch_token_emb if compute_dtype is None else batch_token_emb.astype(compute_dtype)
    if masks is None:
        masks = jnp.ones((B, S), dtype=jnp.int32)
    masks = masks.astype(jnp.int32)

    x_itemsize = jnp.dtype(x.dtype).itemsize
    align = max(_sublane_packing(x.dtype), _sublane_packing(out_dtype))
    TB = block_b if block_b is not None else _pick_block_b(
        B, S, H, x_itemsize, align, _x_buffer_budget_bytes())

    # Explicit scoped-VMEM limit: double-buffered blocks + params + slack for the
    # f32 temporaries (plus one extra x tile of headroom in case Mosaic copies on
    # the (TB*S, H) view).
    x_blk = TB * S * H * x_itemsize
    aux_blk = TB * S * 4 + TB * H * jnp.dtype(out_dtype).itemsize
    vmem_limit = int(2 * (x_blk + aux_blk) + x_blk + 3 * H * 4 + (8 << 20))

    return pl.pallas_call(
        attentive_reducer_kernel,
        out_shape=jax.ShapeDtypeStruct((B, H), out_dtype),
        grid=(pl.cdiv(B, TB),),
        in_specs=[
            pl.BlockSpec((1, H), lambda i: (0, 0)),          # fc weight (query)
            pl.BlockSpec((TB, S, H), lambda i: (i, 0, 0)),   # token embeddings
            pl.BlockSpec((TB, S), lambda i: (i, 0)),         # masks
            pl.BlockSpec((1, H), lambda i: (0, 0)),          # LayerNorm gamma
            pl.BlockSpec((1, H), lambda i: (0, 0)),          # LayerNorm beta
        ],
        out_specs=pl.BlockSpec((TB, H), lambda i: (i, 0)),
        compiler_params=pltpu.CompilerParams(
            dimension_semantics=("parallel",),
            vmem_limit_bytes=vmem_limit),
    )(fc_weight, x, masks, gamma, beta)


def attentive_reducer_ref(x, masks, fc_weight, gamma, beta):
    """Pure-JAX reference mirroring the PyTorch forward (eval mode)."""
    H = x.shape[-1]
    q = fc_weight[0]                                          # (H,)
    scores = jnp.einsum('bsh,h->bs', x, q) / math.sqrt(H)
    scores = jnp.where(masks == 0, -1e9, scores)
    p = jax.nn.softmax(scores, axis=-1)
    att = jnp.einsum('bs,bsh->bh', p, x)
    mean = jnp.mean(att, axis=-1, keepdims=True)
    std = jnp.sqrt(jnp.sum((att - mean) ** 2, axis=-1, keepdims=True) / (H - 1))
    return gamma[0] * (att - mean) / (std + 1e-6) + beta[0]


if __name__ == "__main__":
    B, S, H = 16, 8, 32

    key = jax.random.PRNGKey(0)
    k_x, k_w = jax.random.split(key)

    batch_token_emb = jax.random.normal(k_x, (B, S, H), dtype=jnp.float32)

    # Deterministic parameter init:
    #   fc = nn.Linear(H, 1, bias=False)  -> weight shape (1, H)
    #   transformer.LayerNorm(H)          -> gamma = ones(H), beta = zeros(H)
    bound = 1.0 / math.sqrt(H)
    fc_weight = jax.random.uniform(k_w, (1, H), dtype=jnp.float32,
                                   minval=-bound, maxval=bound)
    gamma = jnp.ones((1, H), dtype=jnp.float32)
    beta = jnp.zeros((1, H), dtype=jnp.float32)

    # masks: 1 = valid token, 0 = padding; varying lengths per example.
    lengths = (jnp.arange(B, dtype=jnp.int32) % S) + 1
    masks = (jnp.arange(S, dtype=jnp.int32)[None, :] < lengths[:, None]).astype(jnp.int32)

    ref = attentive_reducer_ref(batch_token_emb, masks, fc_weight, gamma, beta)

    # Default path: generation-aware tiling (>= 2 grid steps here, TB = 8).
    out = jax.block_until_ready(
        attentive_reducer(batch_token_emb, masks, fc_weight, gamma, beta))
    assert out.shape == (B, H)
    assert jnp.allclose(out, ref, atol=5e-4, rtol=5e-4), (
        f"max abs err {jnp.max(jnp.abs(out - ref))}")

    # Single-block path (whole batch in one grid step) for coverage.
    out1 = jax.block_until_ready(
        attentive_reducer(batch_token_emb, masks, fc_weight, gamma, beta, block_b=B))
    assert jnp.allclose(out1, ref, atol=5e-4, rtol=5e-4), (
        f"max abs err {jnp.max(jnp.abs(out1 - ref))}")

    print("KERNEL_OK")
</pallas_src>

<mosaic_0001>
module attributes {stable_mosaic.version = 11 : i64} {
  func.func @attentive_reducer_kernel(%arg0: i32, %arg1: memref<1x32xf32, #tpu.memory_space<vmem>>, %arg2: memref<8x8x32xf32, #tpu.memory_space<vmem>>, %arg3: memref<8x8xi32, #tpu.memory_space<vmem>>, %arg4: memref<1x32xf32, #tpu.memory_space<vmem>>, %arg5: memref<1x32xf32, #tpu.memory_space<vmem>>, %arg6: memref<8x32xf32, #tpu.memory_space<vmem>>) attributes {dimension_semantics = [#tpu.dimension_semantics<parallel>], iteration_bounds = array<i64: 2>, scalar_prefetch = 0 : i64, scratch_operands = 0 : i64, tpu.core_type = #tpu.core_type<tc>, window_params = [{pipeline_mode = #tpu.pipeline_mode<synchronous>, transform_indices = @transform_0, window_bounds = array<i64: 1, 32>}, {transform_indices = @transform_1, window_bounds = array<i64: 8, 8, 32>}, {transform_indices = @transform_2, window_bounds = array<i64: 8, 8>}, {pipeline_mode = #tpu.pipeline_mode<synchronous>, transform_indices = @transform_3, window_bounds = array<i64: 1, 32>}, {pipeline_mode = #tpu.pipeline_mode<synchronous>, transform_indices = @transform_4, window_bounds = array<i64: 1, 32>}, {transform_indices = @transform_5, window_bounds = array<i64: 8, 32>}]} {
    %c0 = arith.constant 0 : index
    %c0_0 = arith.constant 0 : index
    %c0_1 = arith.constant 0 : index
    %0 = vector.load %arg2[%c0, %c0_0, %c0_1] : memref<8x8x32xf32, #tpu.memory_space<vmem>>, vector<8x8x32xf32>
    %c0_2 = arith.constant 0 : index
    %c0_3 = arith.constant 0 : index
    %1 = vector.load %arg3[%c0_2, %c0_3] : memref<8x8xi32, #tpu.memory_space<vmem>>, vector<8x8xi32>
    %c0_4 = arith.constant 0 : index
    %c0_5 = arith.constant 0 : index
    %2 = vector.load %arg1[%c0_4, %c0_5] : memref<1x32xf32, #tpu.memory_space<vmem>>, vector<1x32xf32>
    %cst = arith.constant 0.176776692 : f32
    %3 = vector.broadcast %cst : f32 to vector<1x32xf32>
    %4 = arith.mulf %2, %3 : vector<1x32xf32>
    %5 = vector.shape_cast %0 : vector<8x8x32xf32> to vector<64x32xf32>
    %6 = vector.shape_cast %4 : vector<1x32xf32> to vector<32x1xf32>
    %cst_6 = arith.constant dense<0.000000e+00> : vector<64x1xf32>
    %7 = tpu.matmul %5, %6, %cst_6 {dimension_numbers = #tpu.dot_dimension_numbers<[1], [0], [0], [1], [0, 0, 1, 1], [], []>} : vector<64x32xf32>, vector<32x1xf32>, vector<64x1xf32> -> vector<64x1xf32>
    %8 = vector.shape_cast %7 : vector<64x1xf32> to vector<8x8xf32>
    %c0_i32 = arith.constant 0 : i32
    %9 = vector.broadcast %c0_i32 : i32 to vector<8x8xi32>
    %10 = arith.cmpi eq, %1, %9 : vector<8x8xi32>
    %cst_7 = arith.constant -1.000000e+09 : f32
    %11 = vector.broadcast %cst_7 : f32 to vector<8x8xf32>
    %12 = arith.select %10, %11, %8 : vector<8x8xi1>, vector<8x8xf32>
    %cst_8 = arith.constant dense<0xFF800000> : vector<8xf32>
    %13 = vector.multi_reduction <maximumf>, %12, %cst_8 [1] : vector<8x8xf32> to vector<8xf32>
    %14 = vector.shape_cast %13 : vector<8xf32> to vector<8x1xf32>
    %15 = vector.broadcast %14 : vector<8x1xf32> to vector<8x8xf32>
    %16 = arith.subf %12, %15 : vector<8x8xf32>
    %17 = math.exp %16 : vector<8x8xf32>
    %cst_9 = arith.constant dense<0.000000e+00> : vector<8xf32>
    %18 = vector.multi_reduction <add>, %17, %cst_9 [1] : vector<8x8xf32> to vector<8xf32>
    %19 = vector.shape_cast %18 : vector<8xf32> to vector<8x1xf32>
    %20 = tpu.reciprocal %19 {approx = true} : vector<8x1xf32> -> vector<8x1xf32>
    %21 = vector.broadcast %20 : vector<8x1xf32> to vector<8x8xf32>
    %22 = arith.mulf %17, %21 : vector<8x8xf32>
    %23 = vector.shape_cast %22 : vector<8x8xf32> to vector<8x1x8xf32>
    "tpu.trace_start"() <{level = 10 : i32, message = "bqk,bkh->bqh"}> : () -> ()
    %cst_10 = arith.constant dense<0.000000e+00> : vector<8x1x32xf32>
    %24 = tpu.matmul %23, %0, %cst_10 {dimension_numbers = #tpu.dot_dimension_numbers<[2], [1], [1], [2], [0, 0, 0, 1, 1, 2], [0], [0]>} : vector<8x1x8xf32>, vector<8x8x32xf32>, vector<8x1x32xf32> -> vector<8x1x32xf32>
    "tpu.trace_stop"() : () -> ()
    %25 = vector.shape_cast %24 : vector<8x1x32xf32> to vector<8x32xf32>
    %cst_11 = arith.constant dense<0.000000e+00> : vector<8xf32>
    %26 = vector.multi_reduction <add>, %25, %cst_11 [1] : vector<8x32xf32> to vector<8xf32>
    %27 = vector.shape_cast %26 : vector<8xf32> to vector<8x1xf32>
    %cst_12 = arith.constant 3.125000e-02 : f32
    %28 = vector.broadcast %cst_12 : f32 to vector<8x1xf32>
    %29 = arith.mulf %27, %28 : vector<8x1xf32>
    %30 = vector.broadcast %29 : vector<8x1xf32> to vector<8x32xf32>
    %31 = arith.subf %25, %30 : vector<8x32xf32>
    %32 = arith.mulf %31, %31 : vector<8x32xf32>
    %cst_13 = arith.constant dense<0.000000e+00> : vector<8xf32>
    %33 = vector.multi_reduction <add>, %32, %cst_13 [1] : vector<8x32xf32> to vector<8xf32>
    %34 = vector.shape_cast %33 : vector<8xf32> to vector<8x1xf32>
    %cst_14 = arith.constant 0.0322580636 : f32
    %35 = vector.broadcast %cst_14 : f32 to vector<8x1xf32>
    %36 = arith.mulf %34, %35 : vector<8x1xf32>
    %37 = math.sqrt %36 : vector<8x1xf32>
    %cst_15 = arith.constant 9.99999997E-7 : f32
    %38 = vector.broadcast %cst_15 : f32 to vector<8x1xf32>
    %39 = arith.addf %37, %38 : vector<8x1xf32>
    %cst_16 = arith.constant 1.000000e+00 : f32
    %40 = vector.broadcast %cst_16 : f32 to vector<8x1xf32>
    %41 = arith.divf %40, %39 : vector<8x1xf32>
    %c0_17 = arith.constant 0 : index
    %c0_18 = arith.constant 0 : index
    %42 = vector.load %arg4[%c0_17, %c0_18] : memref<1x32xf32, #tpu.memory_space<vmem>>, vector<1x32xf32>
    %43 = vector.broadcast %41 : vector<8x1xf32> to vector<8x32xf32>
    %44 = arith.mulf %31, %43 : vector<8x32xf32>
    %45 = vector.broadcast %42 : vector<1x32xf32> to vector<8x32xf32>
    %46 = arith.mulf %45, %44 : vector<8x32xf32>
    %c0_19 = arith.constant 0 : index
    %c0_20 = arith.constant 0 : index
    %47 = vector.load %arg5[%c0_19, %c0_20] : memref<1x32xf32, #tpu.memory_space<vmem>>, vector<1x32xf32>
    %48 = vector.broadcast %47 : vector<1x32xf32> to vector<8x32xf32>
    %49 = arith.addf %46, %48 : vector<8x32xf32>
    %c0_21 = arith.constant 0 : index
    %c0_22 = arith.constant 0 : index
    %50 = vector.load %arg6[%c0_21, %c0_22] : memref<8x32xf32, #tpu.memory_space<vmem>>, vector<8x32xf32>
    tpu.vector_store %arg6[%c0_21, %c0_22], %49 {strides = array<i32>} : memref<8x32xf32, #tpu.memory_space<vmem>>, vector<8x32xf32>,
    return
  }
  func.func @transform_0(%arg0: i32) -> (i32, i32) {
    %c0_i32 = arith.constant 0 : i32
    %c0_i32_0 = arith.constant 0 : i32
    %c0_i32_1 = arith.constant 0 : i32
    return %c0_i32, %c0_i32_0 : i32, i32
  }
  func.func @transform_1(%arg0: i32) -> (i32, i32, i32) {
    %c0_i32 = arith.constant 0 : i32
    %c0_i32_0 = arith.constant 0 : i32
    %c0_i32_1 = arith.constant 0 : i32
    return %arg0, %c0_i32, %c0_i32_0 : i32, i32, i32
  }
  func.func @transform_2(%arg0: i32) -> (i32, i32) {
    %c0_i32 = arith.constant 0 : i32
    %c0_i32_0 = arith.constant 0 : i32
    return %arg0, %c0_i32 : i32, i32
  }
  func.func @transform_3(%arg0: i32) -> (i32, i32) {
    %c0_i32 = arith.constant 0 : i32
    %c0_i32_0 = arith.constant 0 : i32
    %c0_i32_1 = arith.constant 0 : i32
    return %c0_i32, %c0_i32_0 : i32, i32
  }
  func.func @transform_4(%arg0: i32) -> (i32, i32) {
    %c0_i32 = arith.constant 0 : i32
    %c0_i32_0 = arith.constant 0 : i32
    %c0_i32_1 = arith.constant 0 : i32
    return %c0_i32, %c0_i32_0 : i32, i32
  }
  func.func @transform_5(%arg0: i32) -> (i32, i32) {
    %c0_i32 = arith.constant 0 : i32
    %c0_i32_0 = arith.constant 0 : i32
    return %arg0, %c0_i32 : i32, i32
  }
}

</mosaic_0001>

<llo_original>
// kernel: tpu_custom_call.1
$region0: #{tpu_custom_call.1}
  #allocation0 [shape = 'u32[]', space=smem, size = 0x4, offset = 0x4, fixed_abs, tag = 'smem constant byte address 0x4 - core index']
  #allocation1 [shape = 'u32[144,128]{1,0:T(1,128)}', space=vmem, size = 0x12000, scoped, tag = 'internal scratch']
  %s0 = inlined_call_operand.vmem [shape: f32[1,32], index: 0, kind: input, shape index: {}]
  %s1 = inlined_call_operand.hbm [shape: f32[16,8,32], index: 1, kind: input, shape index: {}]
  %s2 = inlined_call_operand.vmem [shape: s32[16,8], index: 2, kind: input, shape index: {}]
  %s3 = inlined_call_operand.vmem [shape: f32[1,32], index: 3, kind: input, shape index: {}]
  %s4 = inlined_call_operand.vmem [shape: f32[1,32], index: 4, kind: input, shape index: {}]
  %s5 = inlined_call_operand.hbm [shape: f32[16,32], index: 5, kind: output, shape index: {}]
  %s6 = sld [smem:[#allocation0]]
  $region57: #{tpu_custom_call.1} parent=0
    _
  %s8 = ssub.s32 1, %s6
  %s9 = scalar_select 0, %s8, %s6
  $region1: #{tpu_custom_call.1} parent=0
    #allocation2 [shape = 'u8[65536]{0}', space=vmem, size = 0x10000, scoped, tag = 'input window, operand 1']
    #allocation3 [shape = 's32[2]{0}', space=sflag, size = 0x8, scoped, tag = 'scoped memory for tpu_custom_call.1']
    #allocation4 [shape = 's32[2]{0}', space=sflag, size = 0x8, scoped, tag = 'scoped memory for tpu_custom_call.1']
    #allocation5 [shape = 'u8[8192]{0}', space=vmem, size = 0x2000, scoped, tag = 'output window, operand 0']
    %10 = vsyncpa [#allocation3], 0
    %s11 = scalar_lea.sflag [#allocation3], 1
    %12 = vsyncpa %s11, 0
    %13 = vsyncpa [#allocation4], 0
    %s14 = scalar_lea.sflag [#allocation4], 1
    %15 = vsyncpa %s14, 0
    loop: start=0, step=1, limit=4
    $region2: #{tpu_custom_call.1} parent=1 // loop_pre_header
      _
    $region3: #{tpu_custom_call.1} parent=1 // loop_header
      %s17 = sphi 0, %s21
      %p18 = scmp.ge.s32.totalorder %s17, 4
      %s25 = sphi 0, %s25
      %s27 = sphi 0, %s25
      %s28 = sphi 0, %s27
      %s42 = sphi 0, %s28
      %s48 = sphi 0, %s50
      %s51 = sphi 0, %s48
      %s52 = sphi 0, %s51
      %s68 = sphi 0, %s52
      %s74 = sphi 0, %s76
      %s77 = sphi 0, %s74
      %s78 = sphi 0, %s77
      %s94 = sphi 0, %s78
      %s98 = sphi 0, %s98
      %s100 = sphi 0, %s98
      %s101 = sphi 0, %s100
      %s115 = sphi 0, %s101
      %s119 = sphi 0, %s119
      %s121 = sphi 0, %s119
      %s122 = sphi 0, %s121
      %s136 = sphi 0, %s122
      %s142 = sphi 0, %s144
      %s145 = sphi 0, %s142
      %s146 = sphi 0, %s145
      %s162 = sphi 0, %s146
    $region4: #{tpu_custom_call.1} parent=1 // loop_header_branch
      %20 = sbr.rel (%p18) target = $region8
    $region5: #{tpu_custom_call.1} parent=1 // loop_body
      %s22 = ssub.s32 %s17, 1
      %s23 = ssub.s32 %s17, 2
      %s24 = sadd.s32 %s17, 1
      %s26 = sadd.s32 %s25, 1
      %p29 = scmp.eq.s32.totalorder %s17, 1
      %p30 = scmp.ne.s32.totalorder %s25, %s27
      %p31 = scmp.eq.s32.totalorder %s17, 0
      %p32 = por %p30, %p31
      %p33 = scmp.ne.s32.totalorder %s25, %s27
      %p34 = scmp.eq.s32.totalorder %s22, 1
      %p35 = por %p33, %p34
      %p36 = scmp.ne.s32.totalorder %s27, %s28
      %p37 = scmp.eq.s32.totalorder %s22, 0
      %p38 = por %p36, %p37
      %p39 = scmp.ne.s32.totalorder %s27, %s28
      %p40 = scmp.eq.s32.totalorder %s23, 1
      %p41 = por %p39, %p40
      %p43 = scmp.ne.s32.totalorder %s28, %s42
      %p44 = scmp.eq.s32.totalorder %s23, 0
      %p45 = por %p43, %p44
      %s46 = ssub.s32 %s17, %s24
      %p47 = scmp.eq.s32.totalorder %s46, 0
      %s49 = sadd.s32 %s48, 1
      %s50 = scalar_select %p47, %s48, %s49
      %p53 = pneg %p47
      %p54 = scmp.eq.s32.totalorder %s17, 1
      %p55 = por %p53, %p54
      %p56 = scmp.ne.s32.totalorder %s48, %s51
      %p57 = scmp.eq.s32.totalorder %s17, 0
      %p58 = por %p56, %p57
      %p59 = scmp.ne.s32.totalorder %s48, %s51
      %p60 = scmp.eq.s32.totalorder %s22, 1
      %p61 = por %p59, %p60
      %p62 = scmp.ne.s32.totalorder %s51, %s52
      %p63 = scmp.eq.s32.totalorder %s22, 0
      %p64 = por %p62, %p63
      %p65 = scmp.ne.s32.totalorder %s51, %s52
      %p66 = scmp.eq.s32.totalorder %s23, 1
      %p67 = por %p65, %p66
      %p69 = scmp.ne.s32.totalorder %s52, %s68
      %p70 = scmp.eq.s32.totalorder %s23, 0
      %p71 = por %p69, %p70
      %s72 = ssub.s32 %s17, %s24
      %p73 = scmp.eq.s32.totalorder %s72, 0
      %s75 = sadd.s32 %s74, 1
      %s76 = scalar_select %p73, %s74, %s75
      %p79 = pneg %p73
      %p80 = scmp.eq.s32.totalorder %s17, 1
      %p81 = por %p79, %p80
      %p82 = scmp.ne.s32.totalorder %s74, %s77
      %p83 = scmp.eq.s32.totalorder %s17, 0
      %p84 = por %p82, %p83
      %p85 = scmp.ne.s32.totalorder %s74, %s77
      %p86 = scmp.eq.s32.totalorder %s22, 1
      %p87 = por %p85, %p86
      %p88 = scmp.ne.s32.totalorder %s77, %s78
      %p89 = scmp.eq.s32.totalorder %s22, 0
      %p90 = por %p88, %p89
      %p91 = scmp.ne.s32.totalorder %s77, %s78
      %p92 = scmp.eq.s32.totalorder %s23, 1
      %p93 = por %p91, %p92
      %p95 = scmp.ne.s32.totalorder %s78, %s94
      %p96 = scmp.eq.s32.totalorder %s23, 0
      %p97 = por %p95, %p96
      %s99 = sadd.s32 %s98, 1
      %p102 = scmp.eq.s32.totalorder %s17, 1
      %p103 = scmp.ne.s32.totalorder %s98, %s100
      %p104 = scmp.eq.s32.totalorder %s17, 0
      %p105 = por %p103, %p104
      %p106 = scmp.ne.s32.totalorder %s98, %s100
      %p107 = scmp.eq.s32.totalorder %s22, 1
      %p108 = por %p106, %p107
      %p109 = scmp.ne.s32.totalorder %s100, %s101
      %p110 = scmp.eq.s32.totalorder %s22, 0
      %p111 = por %p109, %p110
      %p112 = scmp.ne.s32.totalorder %s100, %s101
      %p113 = scmp.eq.s32.totalorder %s23, 1
      %p114 = por %p112, %p113
      %p116 = scmp.ne.s32.totalorder %s101, %s115
      %p117 = scmp.eq.s32.totalorder %s23, 0
      %p118 = por %p116, %p117
      %s120 = sadd.s32 %s119, 1
      %p123 = scmp.eq.s32.totalorder %s17, 1
      %p124 = scmp.ne.s32.totalorder %s119, %s121
      %p125 = scmp.eq.s32.totalorder %s17, 0
      %p126 = por %p124, %p125
      %p127 = scmp.ne.s32.totalorder %s119, %s121
      %p128 = scmp.eq.s32.totalorder %s22, 1
      %p129 = por %p127, %p128
      %p130 = scmp.ne.s32.totalorder %s121, %s122
      %p131 = scmp.eq.s32.totalorder %s22, 0
      %p132 = por %p130, %p131
      %p133 = scmp.ne.s32.totalorder %s121, %s122
      %p134 = scmp.eq.s32.totalorder %s23, 1
      %p135 = por %p133, %p134
      %p137 = scmp.ne.s32.totalorder %s122, %s136
      %p138 = scmp.eq.s32.totalorder %s23, 0
      %p139 = por %p137, %p138
      %s140 = ssub.s32 %s17, %s24
      %p141 = scmp.eq.s32.totalorder %s140, 0
      %s143 = sadd.s32 %s142, 1
      %s144 = scalar_select %p141, %s142, %s143
      %p147 = pneg %p141
      %p148 = scmp.eq.s32.totalorder %s17, 1
      %p149 = por %p147, %p148
      %p150 = scmp.ne.s32.totalorder %s142, %s145
      %p151 = scmp.eq.s32.totalorder %s17, 0
      %p152 = por %p150, %p151
      %p153 = scmp.ne.s32.totalorder %s142, %s145
      %p154 = scmp.eq.s32.totalorder %s22, 1
      %p155 = por %p153, %p154
      %p156 = scmp.ne.s32.totalorder %s145, %s146
      %p157 = scmp.eq.s32.totalorder %s22, 0
      %p158 = por %p156, %p157
      %p159 = scmp.ne.s32.totalorder %s145, %s146
      %p160 = scmp.eq.s32.totalorder %s23, 1
      %p161 = por %p159, %p160
      %p163 = scmp.ne.s32.totalorder %s146, %s162
      %p164 = scmp.eq.s32.totalorder %s23, 0
      %p165 = por %p163, %p164
      %p166 = scmp.le.s32.totalorder 1, %s17
      %p167 = scmp.lt.s32.totalorder %s17, 3
      %p168 = pnand %p166, %p167
      %p169 = pneg %p168
      // Predicated region
      $region9: #{tpu_custom_call.1} parent=5 // pred_check
        _
      $region10: #{tpu_custom_call.1} parent=5 // pred_check_branch
        %171 = sbr.rel (%p168) target = $region12
      $region11: #{tpu_custom_call.1} parent=5 // pred_region
        %s172 = ssub.s32 %s17, 1
        // Predicated region
        $region13: #{tpu_custom_call.1} parent=11 // pred_check
          %p173 = pneg %p38
        $region14: #{tpu_custom_call.1} parent=11 // pred_check_branch
          %175 = sbr.rel (%p173) target = $region16
        $region15: #{tpu_custom_call.1} parent=11 // pred_region
          _
        $region16: #{tpu_custom_call.1} parent=11 // pred_fallthru
          _
        // Predicated region
        $region17: #{tpu_custom_call.1} parent=11 // pred_check
          %p176 = pneg %p111
        $region18: #{tpu_custom_call.1} parent=11 // pred_check_branch
          %178 = sbr.rel (%p176) target = $region20
        $region19: #{tpu_custom_call.1} parent=11 // pred_region
          _
        $region20: #{tpu_custom_call.1} parent=11 // pred_fallthru
          _
        // Predicated region
        $region21: #{tpu_custom_call.1} parent=11 // pred_check
          %p179 = pneg %p132
        $region22: #{tpu_custom_call.1} parent=11 // pred_check_branch
          %181 = sbr.rel (%p179) target = $region24
        $region23: #{tpu_custom_call.1} parent=11 // pred_region
          _
        $region24: #{tpu_custom_call.1} parent=11 // pred_fallthru
          _
      $region12: #{tpu_custom_call.1} parent=5 // pred_fallthru
        _
      %p182 = scmp.lt.s32.totalorder %s17, 2
      // Predicated region
      $region25: #{tpu_custom_call.1} parent=5 // pred_check
        %p183 = pneg %p182
      $region26: #{tpu_custom_call.1} parent=5 // pred_check_branch
        %185 = sbr.rel (%p183) target = $region28
      $region27: #{tpu_custom_call.1} parent=5 // pred_region
        // Predicated region
        $region29: #{tpu_custom_call.1} parent=27 // pred_check
          %p186 = pneg %p58
        $region30: #{tpu_custom_call.1} parent=27 // pred_check_branch
          %188 = sbr.rel (%p186) target = $region32
        $region31: #{tpu_custom_call.1} parent=27 // pred_region
          %s189 = sand.u32 %s48, 1
          %s190 = scalar_lea.sflag [#allocation3], %s189
          %s191 = sand.u32 %s48, 1
          %s192 = smul.addr %s191, 64
          %s193 = scalar_lea.vmem [#allocation2], %s192
          %s194 = smul.u32 8, %s17
          %s196 = ssub.s32 1024, 1024
          %197 = vsyncadd %s190, %s196
          %s198 = smul.addr %s194, 128
          %s199 = scalar_lea.hbm %s1, %s198
          %s200 = sshll.u32 %s193, 4
          %s201 = int_to_ptr.vmem [resolvable:$true] %s200
          %206 = dma.hbm_to_vmem [thread:$0]  %s199, 1024, %s201, %s190, 128, 128, 8
        $region32: #{tpu_custom_call.1} parent=27 // pred_fallthru
          _
        // Predicated region
        $region33: #{tpu_custom_call.1} parent=27 // pred_check
          %p207 = pneg %p84
        $region34: #{tpu_custom_call.1} parent=27 // pred_check_branch
          %209 = sbr.rel (%p207) target = $region36
        $region35: #{tpu_custom_call.1} parent=27 // pred_region
          %p210 = scmp.lt.s32.totalorder %s17, 1
          %s211 = scalar_select %p210, %s17, 1
          %s212 = smul.addr %s211, 8
          %s213 = scalar_lea.vmem %s2, %s212
        $region36: #{tpu_custom_call.1} parent=27 // pred_fallthru
          _
      $region28: #{tpu_custom_call.1} parent=5 // pred_fallthru
        _
      %p214 = scmp.le.s32.totalorder 1, %s17
      %p215 = scmp.lt.s32.totalorder %s17, 3
      %p216 = pnand %p214, %p215
      %p217 = pneg %p216
      // Predicated region
      $region37: #{tpu_custom_call.1} parent=5 // pred_check
        _
      $region38: #{tpu_custom_call.1} parent=5 // pred_check_branch
        %219 = sbr.rel (%p216) target = $region40
      $region39: #{tpu_custom_call.1} parent=5 // pred_region
        %s220 = ssub.s32 %s17, 1
        %s221 = sand.u32 %s51, 1
        %s222 = scalar_lea.sflag [#allocation3], %s221
        %s223 = sand.u32 %s51, 1
        %s224 = smul.addr %s223, 64
        %s225 = scalar_lea.vmem [#allocation2], %s224
        // Predicated region
        $region41: #{tpu_custom_call.1} parent=39 // pred_check
          %p226 = pneg %p64
        $region42: #{tpu_custom_call.1} parent=39 // pred_check_branch
          %228 = sbr.rel (%p226) target = $region44
        $region43: #{tpu_custom_call.1} parent=39 // pred_region
          %229 = dma.done %s222, 1024
        $region44: #{tpu_custom_call.1} parent=39 // pred_fallthru
          _
        %p230 = pneg %p38
        %p231 = pneg %p35
        %s232 = sand.u32 %s51, 1
        %s233 = scalar_lea.sflag [#allocation3], %s232
        %s234 = sand.u32 %s51, 1
        %s235 = smul.addr %s234, 64
        %s236 = scalar_lea.vmem [#allocation2], %s235
        %p237 = pneg %p64
        %p238 = pneg %p61
        %p239 = scmp.lt.s32.totalorder %s22, 1
        %s240 = scalar_select %p239, %s22, 1
        %s241 = smul.addr %s240, 8
        %s242 = scalar_lea.vmem %s2, %s241
        %p243 = pneg %p90
        %p244 = pneg %p87
        %p245 = pneg %p111
        %p246 = pneg %p108
        %p247 = pneg %p132
        %p248 = pneg %p129
        %p249 = pneg %p158
        %p250 = pneg %p155
        %s251 = sand.u32 %s145, 1
        %s252 = scalar_lea.sflag [#allocation4], %s251
        %s253 = sand.u32 %s145, 1
        %s254 = smul.addr %s253, 8
        %s255 = scalar_lea.vmem [#allocation5], %s254
        %s256 = smul.u32 8, %s22
        %p257 = scmp.lt.s32.totalorder %s22, 1
        %s258 = scalar_select %p257, %s22, 1
        %s259 = smul.addr %s258, 8
        %s260 = scalar_lea.vmem %s2, %s259
        %v261 = vld [vmem:[%s225] sm:$0xff]
        %v262 = vld [vmem:[%s225 + $0x8] sm:$0xff]
        %v263 = vld [vmem:[%s225 + $0x10] sm:$0xff]
        %v264 = vld [vmem:[%s225 + $0x18] sm:$0xff]
        %v265 = vld [vmem:[%s225 + $0x20] sm:$0xff]
        %v266 = vld [vmem:[%s225 + $0x28] sm:$0xff]
        %v267 = vld [vmem:[%s225 + $0x30] sm:$0xff]
        %v268 = vld [vmem:[%s225 + $0x38] sm:$0xff]
        %v269 = vld [vmem:[%s260] sm:$0xff]
        %v270 = vld [vmem:[%s0] sm:$0x1]
        %v271 = vmul.f32 %v270, 0.17677669
        %v272 = vlaneseq
        %v273 = vshrl.u32 %v272, 7
        %v274 = vsub.s32 0, %v273
        %v275 = vrot.slane %v271, %v274
        %277 = vbcast.lane.b32.xlu0 %v275, 256
        %v278 = vpop.permute.xlu0 %277
        %s280 = sor.u32 256, 8
        %281 = vbcast.lane.b32.xlu0 %v275, %s280
        %v282 = vpop.permute.xlu0 %281
        %s284 = sor.u32 256, 16
        %285 = vbcast.lane.b32.xlu0 %v275, %s284
        %v286 = vpop.permute.xlu0 %285
        %s288 = sor.u32 256, 24
        %289 = vbcast.lane.b32.xlu0 %v275, %s288
        %v290 = vpop.permute.xlu0 %289
        %vm291 = vcmask 261120
        %v293 = vsel %vm291, %v261, 0
        %v296 = vsel %vm291, %v262, 0
        %v299 = vsel %vm291, %v263, 0
        %v302 = vsel %vm291, %v264, 0
        %v305 = vsel %vm291, %v265, 0
        %v308 = vsel %vm291, %v266, 0
        %v311 = vsel %vm291, %v267, 0
        %v314 = vsel %vm291, %v268, 0
        %316 = vmatprep.subr.mxu0 0.0
        %317 = vmatpush1.msra.mxu0 0.0
        %318 = vmatprep.subr.mxu0 0.0
        %319 = vmatpush1.msra.mxu0 0.0
        %320 = vmatprep.subr.mxu0 0.0
        %321 = vmatpush1.msra.mxu0 0.0
        %322 = vmatprep.subr.mxu0 0.0
        %323 = vmatpush1.msra.mxu0 0.0
        %324 = vmatprep.subr.mxu0 0.0
        %325 = vmatpush1.msra.mxu0 0.0
        %326 = vmatprep.subr.mxu0 0.0
        %327 = vmatpush1.msra.mxu0 0.0
        %328 = vmatprep.subr.mxu0 0.0
        %329 = vmatpush1.msra.mxu0 0.0
        %330 = vmatprep.subr.mxu0 0.0
        %331 = vmatpush1.msra.mxu0 0.0
        %332 = vmatprep.subr.mxu0 0.0
        %333 = vmatpush1.msra.mxu0 0.0
        %334 = vmatprep.subr.mxu0 0.0
        %335 = vmatpush1.msra.mxu0 0.0
        %336 = vmatprep.subr.mxu0 0.0
        %337 = vmatpush1.msra.mxu0 0.0
        %338 = vmatprep.subr.mxu0 0.0
        %339 = vmatpush1.msra.mxu0 0.0
        %340 = vmatprep.subr.mxu0 0.0
        %341 = vmatpush1.msra.mxu0 %v290
        %342 = vmatprep.subr.mxu0 0.0
        %343 = vmatpush1.msra.mxu0 %v286
        %344 = vmatprep.subr.mxu0 0.0
        %345 = vmatpush1.msra.mxu0 %v282
        %346 = vmatprep.subr.mxu0 0.0
        %347 = vmatpush1.msra.mxu0 %v278
        %348 = vmatprep.subr.mxu0 0.0
        %349 = vmatpush2.msra.mxu0 0.0
        %350 = vmatprep.subr.mxu0 0.0
        %351 = vmatpush2.msra.mxu0 0.0
        %352 = vmatprep.subr.mxu0 0.0
        %353 = vmatpush2.msra.mxu0 0.0
        %354 = vmatprep.subr.mxu0 0.0
        %355 = vmatpush2.msra.mxu0 0.0
        %356 = vmatprep.subr.mxu0 0.0
        %357 = vmatpush2.msra.mxu0 0.0
        %358 = vmatprep.subr.mxu0 0.0
        %359 = vmatpush2.msra.mxu0 0.0
        %360 = vmatprep.subr.mxu0 0.0
        %361 = vmatpush2.msra.mxu0 0.0
        %362 = vmatprep.subr.mxu0 0.0
        %363 = vmatpush2.msra.mxu0 0.0
        %364 = vmatprep.subr.mxu0 0.0
        %365 = vmatpush2.msra.mxu0 0.0
        %366 = vmatprep.subr.mxu0 0.0
        %367 = vmatpush2.msra.mxu0 0.0
        %368 = vmatprep.subr.mxu0 0.0
        %369 = vmatpush2.msra.mxu0 0.0
        %370 = vmatprep.subr.mxu0 0.0
        %371 = vmatpush2.msra.mxu0 0.0
        %372 = vmatprep.subr.mxu0 0.0
        %373 = vmatpush2.msra.mxu0 0.0
        %374 = vmatprep.subr.mxu0 0.0
        %375 = vmatpush2.msra.mxu0 0.0
        %376 = vmatprep.subr.mxu0 0.0
        %377 = vmatpush2.msra.mxu0 0.0
        %378 = vmatprep.subr.mxu0 0.0
        %379 = vmatpush2.msra.mxu0 0.0
        %380 = vmatprep.mubr.f32.mxu0 0.0
        %381 = vmatmul.mubr.f32.gmra.mxu0 %v293
        %v382 = vpop.f32.mrf.mxu0
        %v383 = vadd.f32 0.0, %v382
        %v384 = vpop.f32.mrf.mxu0
        %385 = vmatprep.mubr.f32.mxu0 0.0
        %386 = vmatmul.mubr.f32.gmra.mxu0 %v296
        %v387 = vpop.f32.mrf.mxu0
        %v388 = vadd.f32 0.0, %v387
        %v389 = vpop.f32.mrf.mxu0
        %390 = vmatprep.mubr.f32.mxu0 0.0
        %391 = vmatmul.mubr.f32.gmra.mxu0 %v299
        %v392 = vpop.f32.mrf.mxu0
        %v393 = vadd.f32 0.0, %v392
        %v394 = vpop.f32.mrf.mxu0
        %395 = vmatprep.mubr.f32.mxu0 0.0
        %396 = vmatmul.mubr.f32.gmra.mxu0 %v302
        %v397 = vpop.f32.mrf.mxu0
        %v398 = vadd.f32 0.0, %v397
        %v399 = vpop.f32.mrf.mxu0
        %400 = vmatprep.mubr.f32.mxu0 0.0
        %401 = vmatmul.mubr.f32.gmra.mxu0 %v305
        %v402 = vpop.f32.mrf.mxu0
        %v403 = vadd.f32 0.0, %v402
        %v404 = vpop.f32.mrf.mxu0
        %405 = vmatprep.mubr.f32.mxu0 0.0
        %406 = vmatmul.mubr.f32.gmra.mxu0 %v308
        %v407 = vpop.f32.mrf.mxu0
        %v408 = vadd.f32 0.0, %v407
        %v409 = vpop.f32.mrf.mxu0
        %410 = vmatprep.mubr.f32.mxu0 0.0
        %411 = vmatmul.mubr.f32.gmra.mxu0 %v311
        %v412 = vpop.f32.mrf.mxu0
        %v413 = vadd.f32 0.0, %v412
        %v414 = vpop.f32.mrf.mxu0
        %415 = vmatprep.mubr.f32.mxu0 0.0
        %416 = vmatmul.mubr.f32.gmra.mxu0 %v314
        %v417 = vpop.f32.mrf.mxu0
        %v418 = vadd.f32 0.0, %v417
        %v419 = vpop.f32.mrf.mxu0
        %420 = vdwg.mxu0
        %vm421 = vcmp.eq.s32.totalorder %v269, 0
        %430 = vset.pattern.permute.xlu0 0
        %431 = vperm.xlu0 %430, %v383
        %v432 = vpop.permute.xlu0 %431
        %433 = vset.pattern.permute.xlu0 0
        %434 = vperm.xlu0 %433, %v388
        %v435 = vpop.permute.xlu0 %434
        %436 = vset.pattern.permute.xlu0 0
        %437 = vperm.xlu0 %436, %v393
        %v438 = vpop.permute.xlu0 %437
        %439 = vset.pattern.permute.xlu0 0
        %440 = vperm.xlu0 %439, %v398
        %v441 = vpop.permute.xlu0 %440
        %442 = vset.pattern.permute.xlu0 0
        %443 = vperm.xlu0 %442, %v403
        %v444 = vpop.permute.xlu0 %443
        %445 = vset.pattern.permute.xlu0 0
        %446 = vperm.xlu0 %445, %v408
        %v447 = vpop.permute.xlu0 %446
        %448 = vset.pattern.permute.xlu0 0
        %449 = vperm.xlu0 %448, %v413
        %v450 = vpop.permute.xlu0 %449
        %451 = vset.pattern.permute.xlu0 0
        %452 = vperm.xlu0 %451, %v418
        %v453 = vpop.permute.xlu0 %452
        %v454 = vlaneseq
        %v455 = vand.u32 %v454, 127
        %v456 = vlaneseq
        %v457 = vshrl.u32 %v456, 7
        %v458 = vsub.s32 %v455, %v457
        %v459 = vrot.slane %v432, %v458
        %v460 = vlaneseq
        %v461 = vshrl.u32 %v460, 7
        %v462 = vsub.s32 %v455, %v461
        %v463 = vrot.slane %v435, %v462
        %v464 = vlaneseq
        %v465 = vshrl.u32 %v464, 7
        %v466 = vsub.s32 %v455, %v465
        %v467 = vrot.slane %v438, %v466
        %v468 = vlaneseq
        %v469 = vshrl.u32 %v468, 7
        %v470 = vsub.s32 %v455, %v469
        %v471 = vrot.slane %v441, %v470
        %v472 = vlaneseq
        %v473 = vshrl.u32 %v472, 7
        %v474 = vsub.s32 %v455, %v473
        %v475 = vrot.slane %v444, %v474
        %v476 = vlaneseq
        %v477 = vshrl.u32 %v476, 7
        %v478 = vsub.s32 %v455, %v477
        %v479 = vrot.slane %v447, %v478
        %v480 = vlaneseq
        %v481 = vshrl.u32 %v480, 7
        %v482 = vsub.s32 %v455, %v481
        %v483 = vrot.slane %v450, %v482
        %v484 = vlaneseq
        %v485 = vshrl.u32 %v484, 7
        %v486 = vsub.s32 %v455, %v485
        %v487 = vrot.slane %v453, %v486
        %vm488 = vcmask 1041409
        %v489 = vsel %vm488, %v463, %v459
        %vm490 = vcmask 1042434
        %v491 = vsel %vm490, %v467, %v489
        %vm492 = vcmask 1043459
        %v493 = vsel %vm492, %v471, %v491
        %vm494 = vcmask 1044484
        %v495 = vsel %vm494, %v475, %v493
        %vm496 = vcmask 1045509
        %v497 = vsel %vm496, %v479, %v495
        %vm498 = vcmask 1046534
        %v499 = vsel %vm498, %v483, %v497
        %vm500 = vcmask 1047559
        %v501 = vsel %vm500, %v487, %v499
        %v503 = vsel %vm421, -1e+09, %v501
        %vm504 = vcmask 64512
        %v505 = vsel %vm504, %v503, -inf
        %506 = vmax.xlane.f32.xlu0 %v505
        %v507 = vpop.xlane.xlu0 %506
        %v508 = vsub.f32 %v503, %v507
        %v509 = vmul.f32 %v508, 1.442695
        %v510 = vpow.pop %v509
        %v511 = vsel %vm504, %v510, 0.0
        %512 = vadd.xlane.f32.xlu0 %v511
        %v513 = vpop.xlane.xlu0 %512
        %v514 = vrcp.pop %v513
        %v515 = vmul.f32 %v510, %v514
        %v517 = vcombine.high %v515, %v515
        %v519 = vunpack.c.l.s4 1966171168
        %v520 = vunpack.c.0.s8 %v519
        %v521 = vlaneseq
        %v522 = vshrl.u32 %v521, 7
        %v523 = vsub.s32 %v520, %v522
        %v524 = vrot.slane %v515, %v523
        %v526 = vunpack.c.l.s4 1966171168
        %v527 = vunpack.c.0.s8 %v526
        %v528 = vlaneseq
        %v529 = vshrl.u32 %v528, 7
        %v530 = vsub.s32 %v527, %v529
        %v531 = vrot.slane %v517, %v530
        %v532 = vcombine.high %v524, %v524
        %v533 = vcombine.high %v531, %v531
        %v535 = vunpack.c.l.s4 1966171168
        %v536 = vunpack.c.0.s8 %v535
        %v537 = vlaneseq
        %v538 = vshrl.u32 %v537, 7
        %v539 = vsub.s32 %v536, %v538
        %v540 = vrot.slane %v524, %v539
        %v542 = vunpack.c.l.s4 1966171168
        %v543 = vunpack.c.0.s8 %v542
        %v544 = vlaneseq
        %v545 = vshrl.u32 %v544, 7
        %v546 = vsub.s32 %v543, %v545
        %v547 = vrot.slane %v531, %v546
        %v549 = vunpack.c.l.s4 1966171168
        %v550 = vunpack.c.0.s8 %v549
        %v551 = vlaneseq
        %v552 = vshrl.u32 %v551, 7
        %v553 = vsub.s32 %v550, %v552
        %v554 = vrot.slane %v532, %v553
        %v556 = vunpack.c.l.s4 1966171168
        %v557 = vunpack.c.0.s8 %v556
        %v558 = vlaneseq
        %v559 = vshrl.u32 %v558, 7
        %v560 = vsub.s32 %v557, %v559
        %v561 = vrot.slane %v533, %v560
        %v562 = vcombine.high %v540, %v540
        %v563 = vcombine.high %v547, %v547
        %v564 = vcombine.high %v554, %v554
        %v565 = vcombine.high %v561, %v561
        %v566 = vsel %vm504, %v540, 0
        %568 = vmatprep.subr.mxu0 0.0
        %569 = vmatpush1.msra.mxu0 0.0
        %570 = vmatprep.subr.mxu0 0.0
        %571 = vmatpush1.msra.mxu0 0.0
        %572 = vmatprep.subr.mxu0 0.0
        %573 = vmatpush1.msra.mxu0 0.0
        %574 = vmatprep.subr.mxu0 0.0
        %575 = vmatpush1.msra.mxu0 0.0
        %576 = vmatprep.subr.mxu0 0.0
        %577 = vmatpush1.msra.mxu0 0.0
        %578 = vmatprep.subr.mxu0 0.0
        %579 = vmatpush1.msra.mxu0 0.0
        %580 = vmatprep.subr.mxu0 0.0
        %581 = vmatpush1.msra.mxu0 0.0
        %582 = vmatprep.subr.mxu0 0.0
        %583 = vmatpush1.msra.mxu0 0.0
        %584 = vmatprep.subr.mxu0 0.0
        %585 = vmatpush1.msra.mxu0 0.0
        %586 = vmatprep.subr.mxu0 0.0
        %587 = vmatpush1.msra.mxu0 0.0
        %588 = vmatprep.subr.mxu0 0.0
        %589 = vmatpush1.msra.mxu0 0.0
        %590 = vmatprep.subr.mxu0 0.0
        %591 = vmatpush1.msra.mxu0 0.0
        %592 = vmatprep.subr.mxu0 0.0
        %593 = vmatpush1.msra.mxu0 0.0
        %594 = vmatprep.subr.mxu0 0.0
        %595 = vmatpush1.msra.mxu0 0.0
        %596 = vmatprep.subr.mxu0 0.0
        %597 = vmatpush1.msra.mxu0 0.0
        %598 = vmatprep.subr.mxu0 0.0
        %599 = vmatpush1.msra.mxu0 %v261
        %600 = vmatprep.subr.mxu0 0.0
        %601 = vmatpush2.msra.mxu0 0.0
        %602 = vmatprep.subr.mxu0 0.0
        %603 = vmatpush2.msra.mxu0 0.0
        %604 = vmatprep.subr.mxu0 0.0
        %605 = vmatpush2.msra.mxu0 0.0
        %606 = vmatprep.subr.mxu0 0.0
        %607 = vmatpush2.msra.mxu0 0.0
        %608 = vmatprep.subr.mxu0 0.0
        %609 = vmatpush2.msra.mxu0 0.0
        %610 = vmatprep.subr.mxu0 0.0
        %611 = vmatpush2.msra.mxu0 0.0
        %612 = vmatprep.subr.mxu0 0.0
        %613 = vmatpush2.msra.mxu0 0.0
        %614 = vmatprep.subr.mxu0 0.0
        %615 = vmatpush2.msra.mxu0 0.0
        %616 = vmatprep.subr.mxu0 0.0
        %617 = vmatpush2.msra.mxu0 0.0
        %618 = vmatprep.subr.mxu0 0.0
        %619 = vmatpush2.msra.mxu0 0.0
        %620 = vmatprep.subr.mxu0 0.0
        %621 = vmatpush2.msra.mxu0 0.0
        %622 = vmatprep.subr.mxu0 0.0
        %623 = vmatpush2.msra.mxu0 0.0
        %624 = vmatprep.subr.mxu0 0.0
        %625 = vmatpush2.msra.mxu0 0.0
        %626 = vmatprep.subr.mxu0 0.0
        %627 = vmatpush2.msra.mxu0 0.0
        %628 = vmatprep.subr.mxu0 0.0
        %629 = vmatpush2.msra.mxu0 0.0
        %630 = vmatprep.subr.mxu0 0.0
        %631 = vmatpush2.msra.mxu0 0.0
        %632 = vmatprep.mubr.f32.mxu0 0.0
        %633 = vmatmul.mubr.f32.gmra.mxu0 %v566
        %v634 = vpop.f32.mrf.mxu0
        %v635 = vadd.f32 0.0, %v634
        %v636 = vpop.f32.mrf.mxu0
        %637 = vdwg.mxu0
        %v638 = vsel %vm504, %v554, 0
        %640 = vmatprep.subr.mxu0 0.0
        %641 = vmatpush1.msra.mxu0 0.0
        %642 = vmatprep.subr.mxu0 0.0
        %643 = vmatpush1.msra.mxu0 0.0
        %644 = vmatprep.subr.mxu0 0.0
        %645 = vmatpush1.msra.mxu0 0.0
        %646 = vmatprep.subr.mxu0 0.0
        %647 = vmatpush1.msra.mxu0 0.0
        %648 = vmatprep.subr.mxu0 0.0
        %649 = vmatpush1.msra.mxu0 0.0
        %650 = vmatprep.subr.mxu0 0.0
        %651 = vmatpush1.msra.mxu0 0.0
        %652 = vmatprep.subr.mxu0 0.0
        %653 = vmatpush1.msra.mxu0 0.0
        %654 = vmatprep.subr.mxu0 0.0
        %655 = vmatpush1.msra.mxu0 0.0
        %656 = vmatprep.subr.mxu0 0.0
        %657 = vmatpush1.msra.mxu0 0.0
        %658 = vmatprep.subr.mxu0 0.0
        %659 = vmatpush1.msra.mxu0 0.0
        %660 = vmatprep.subr.mxu0 0.0
        %661 = vmatpush1.msra.mxu0 0.0
        %662 = vmatprep.subr.mxu0 0.0
        %663 = vmatpush1.msra.mxu0 0.0
        %664 = vmatprep.subr.mxu0 0.0
        %665 = vmatpush1.msra.mxu0 0.0
        %666 = vmatprep.subr.mxu0 0.0
        %667 = vmatpush1.msra.mxu0 0.0
        %668 = vmatprep.subr.mxu0 0.0
        %669 = vmatpush1.msra.mxu0 0.0
        %670 = vmatprep.subr.mxu0 0.0
        %671 = vmatpush1.msra.mxu0 %v262
        %672 = vmatprep.subr.mxu0 0.0
        %673 = vmatpush2.msra.mxu0 0.0
        %674 = vmatprep.subr.mxu0 0.0
        %675 = vmatpush2.msra.mxu0 0.0
        %676 = vmatprep.subr.mxu0 0.0
        %677 = vmatpush2.msra.mxu0 0.0
        %678 = vmatprep.subr.mxu0 0.0
        %679 = vmatpush2.msra.mxu0 0.0
        %680 = vmatprep.subr.mxu0 0.0
        %681 = vmatpush2.msra.mxu0 0.0
        %682 = vmatprep.subr.mxu0 0.0
        %683 = vmatpush2.msra.mxu0 0.0
        %684 = vmatprep.subr.mxu0 0.0
        %685 = vmatpush2.msra.mxu0 0.0
        %686 = vmatprep.subr.mxu0 0.0
        %687 = vmatpush2.msra.mxu0 0.0
        %688 = vmatprep.subr.mxu0 0.0
        %689 = vmatpush2.msra.mxu0 0.0
        %690 = vmatprep.subr.mxu0 0.0
        %691 = vmatpush2.msra.mxu0 0.0
        %692 = vmatprep.subr.mxu0 0.0
        %693 = vmatpush2.msra.mxu0 0.0
        %694 = vmatprep.subr.mxu0 0.0
        %695 = vmatpush2.msra.mxu0 0.0
        %696 = vmatprep.subr.mxu0 0.0
        %697 = vmatpush2.msra.mxu0 0.0
        %698 = vmatprep.subr.mxu0 0.0
        %699 = vmatpush2.msra.mxu0 0.0
        %700 = vmatprep.subr.mxu0 0.0
        %701 = vmatpush2.msra.mxu0 0.0
        %702 = vmatprep.subr.mxu0 0.0
        %703 = vmatpush2.msra.mxu0 0.0
        %704 = vmatprep.mubr.f32.mxu0 0.0
        %705 = vmatmul.mubr.f32.gmra.mxu0 %v638
        %v706 = vpop.f32.mrf.mxu0
        %v707 = vadd.f32 0.0, %v706
        %v708 = vpop.f32.mrf.mxu0
        %709 = vdwg.mxu0
        %v710 = vsel %vm504, %v562, 0
        %712 = vmatprep.subr.mxu0 0.0
        %713 = vmatpush1.msra.mxu0 0.0
        %714 = vmatprep.subr.mxu0 0.0
        %715 = vmatpush1.msra.mxu0 0.0
        %716 = vmatprep.subr.mxu0 0.0
        %717 = vmatpush1.msra.mxu0 0.0
        %718 = vmatprep.subr.mxu0 0.0
        %719 = vmatpush1.msra.mxu0 0.0
        %720 = vmatprep.subr.mxu0 0.0
        %721 = vmatpush1.msra.mxu0 0.0
        %722 = vmatprep.subr.mxu0 0.0
        %723 = vmatpush1.msra.mxu0 0.0
        %724 = vmatprep.subr.mxu0 0.0
        %725 = vmatpush1.msra.mxu0 0.0
        %726 = vmatprep.subr.mxu0 0.0
        %727 = vmatpush1.msra.mxu0 0.0
        %728 = vmatprep.subr.mxu0 0.0
        %729 = vmatpush1.msra.mxu0 0.0
        %730 = vmatprep.subr.mxu0 0.0
        %731 = vmatpush1.msra.mxu0 0.0
        %732 = vmatprep.subr.mxu0 0.0
        %733 = vmatpush1.msra.mxu0 0.0
        %734 = vmatprep.subr.mxu0 0.0
        %735 = vmatpush1.msra.mxu0 0.0
        %736 = vmatprep.subr.mxu0 0.0
        %737 = vmatpush1.msra.mxu0 0.0
        %738 = vmatprep.subr.mxu0 0.0
        %739 = vmatpush1.msra.mxu0 0.0
        %740 = vmatprep.subr.mxu0 0.0
        %741 = vmatpush1.msra.mxu0 0.0
        %742 = vmatprep.subr.mxu0 0.0
        %743 = vmatpush1.msra.mxu0 %v263
        %744 = vmatprep.subr.mxu0 0.0
        %745 = vmatpush2.msra.mxu0 0.0
        %746 = vmatprep.subr.mxu0 0.0
        %747 = vmatpush2.msra.mxu0 0.0
        %748 = vmatprep.subr.mxu0 0.0
        %749 = vmatpush2.msra.mxu0 0.0
        %750 = vmatprep.subr.mxu0 0.0
        %751 = vmatpush2.msra.mxu0 0.0
        %752 = vmatprep.subr.mxu0 0.0
        %753 = vmatpush2.msra.mxu0 0.0
        %754 = vmatprep.subr.mxu0 0.0
        %755 = vmatpush2.msra.mxu0 0.0
        %756 = vmatprep.subr.mxu0 0.0
        %757 = vmatpush2.msra.mxu0 0.0
        %758 = vmatprep.subr.mxu0 0.0
        %759 = vmatpush2.msra.mxu0 0.0
        %760 = vmatprep.subr.mxu0 0.0
        %761 = vmatpush2.msra.mxu0 0.0
        %762 = vmatprep.subr.mxu0 0.0
        %763 = vmatpush2.msra.mxu0 0.0
        %764 = vmatprep.subr.mxu0 0.0
        %765 = vmatpush2.msra.mxu0 0.0
        %766 = vmatprep.subr.mxu0 0.0
        %767 = vmatpush2.msra.mxu0 0.0
        %768 = vmatprep.subr.mxu0 0.0
        %769 = vmatpush2.msra.mxu0 0.0
        %770 = vmatprep.subr.mxu0 0.0
        %771 = vmatpush2.msra.mxu0 0.0
        %772 = vmatprep.subr.mxu0 0.0
        %773 = vmatpush2.msra.mxu0 0.0
        %774 = vmatprep.subr.mxu0 0.0
        %775 = vmatpush2.msra.mxu0 0.0
        %776 = vmatprep.mubr.f32.mxu0 0.0
        %777 = vmatmul.mubr.f32.gmra.mxu0 %v710
        %v778 = vpop.f32.mrf.mxu0
        %v779 = vadd.f32 0.0, %v778
        %v780 = vpop.f32.mrf.mxu0
        %781 = vdwg.mxu0
        %v782 = vsel %vm504, %v564, 0
        %784 = vmatprep.subr.mxu0 0.0
        %785 = vmatpush1.msra.mxu0 0.0
        %786 = vmatprep.subr.mxu0 0.0
        %787 = vmatpush1.msra.mxu0 0.0
        %788 = vmatprep.subr.mxu0 0.0
        %789 = vmatpush1.msra.mxu0 0.0
        %790 = vmatprep.subr.mxu0 0.0
        %791 = vmatpush1.msra.mxu0 0.0
        %792 = vmatprep.subr.mxu0 0.0
        %793 = vmatpush1.msra.mxu0 0.0
        %794 = vmatprep.subr.mxu0 0.0
        %795 = vmatpush1.msra.mxu0 0.0
        %796 = vmatprep.subr.mxu0 0.0
        %797 = vmatpush1.msra.mxu0 0.0
        %798 = vmatprep.subr.mxu0 0.0
        %799 = vmatpush1.msra.mxu0 0.0
        %800 = vmatprep.subr.mxu0 0.0
        %801 = vmatpush1.msra.mxu0 0.0
        %802 = vmatprep.subr.mxu0 0.0
        %803 = vmatpush1.msra.mxu0 0.0
        %804 = vmatprep.subr.mxu0 0.0
        %805 = vmatpush1.msra.mxu0 0.0
        %806 = vmatprep.subr.mxu0 0.0
        %807 = vmatpush1.msra.mxu0 0.0
        %808 = vmatprep.subr.mxu0 0.0
        %809 = vmatpush1.msra.mxu0 0.0
        %810 = vmatprep.subr.mxu0 0.0
        %811 = vmatpush1.msra.mxu0 0.0
        %812 = vmatprep.subr.mxu0 0.0
        %813 = vmatpush1.msra.mxu0 0.0
        %814 = vmatprep.subr.mxu0 0.0
        %815 = vmatpush1.msra.mxu0 %v264
        %816 = vmatprep.subr.mxu0 0.0
        %817 = vmatpush2.msra.mxu0 0.0
        %818 = vmatprep.subr.mxu0 0.0
        %819 = vmatpush2.msra.mxu0 0.0
        %820 = vmatprep.subr.mxu0 0.0
        %821 = vmatpush2.msra.mxu0 0.0
        %822 = vmatprep.subr.mxu0 0.0
        %823 = vmatpush2.msra.mxu0 0.0
        %824 = vmatprep.subr.mxu0 0.0
        %825 = vmatpush2.msra.mxu0 0.0
        %826 = vmatprep.subr.mxu0 0.0
        %827 = vmatpush2.msra.mxu0 0.0
        %828 = vmatprep.subr.mxu0 0.0
        %829 = vmatpush2.msra.mxu0 0.0
        %830 = vmatprep.subr.mxu0 0.0
        %831 = vmatpush2.msra.mxu0 0.0
        %832 = vmatprep.subr.mxu0 0.0
        %833 = vmatpush2.msra.mxu0 0.0
        %834 = vmatprep.subr.mxu0 0.0
        %835 = vmatpush2.msra.mxu0 0.0
        %836 = vmatprep.subr.mxu0 0.0
        %837 = vmatpush2.msra.mxu0 0.0
        %838 = vmatprep.subr.mxu0 0.0
        %839 = vmatpush2.msra.mxu0 0.0
        %840 = vmatprep.subr.mxu0 0.0
        %841 = vmatpush2.msra.mxu0 0.0
        %842 = vmatprep.subr.mxu0 0.0
        %843 = vmatpush2.msra.mxu0 0.0
        %844 = vmatprep.subr.mxu0 0.0
        %845 = vmatpush2.msra.mxu0 0.0
        %846 = vmatprep.subr.mxu0 0.0
        %847 = vmatpush2.msra.mxu0 0.0
        %848 = vmatprep.mubr.f32.mxu0 0.0
        %849 = vmatmul.mubr.f32.gmra.mxu0 %v782
        %v850 = vpop.f32.mrf.mxu0
        %v851 = vadd.f32 0.0, %v850
        %v852 = vpop.f32.mrf.mxu0
        %853 = vdwg.mxu0
        %v854 = vsel %vm504, %v547, 0
        %856 = vmatprep.subr.mxu0 0.0
        %857 = vmatpush1.msra.mxu0 0.0
        %858 = vmatprep.subr.mxu0 0.0
        %859 = vmatpush1.msra.mxu0 0.0
        %860 = vmatprep.subr.mxu0 0.0
        %861 = vmatpush1.msra.mxu0 0.0
        %862 = vmatprep.subr.mxu0 0.0
        %863 = vmatpush1.msra.mxu0 0.0
        %864 = vmatprep.subr.mxu0 0.0
        %865 = vmatpush1.msra.mxu0 0.0
        %866 = vmatprep.subr.mxu0 0.0
        %867 = vmatpush1.msra.mxu0 0.0
        %868 = vmatprep.subr.mxu0 0.0
        %869 = vmatpush1.msra.mxu0 0.0
        %870 = vmatprep.subr.mxu0 0.0
        %871 = vmatpush1.msra.mxu0 0.0
        %872 = vmatprep.subr.mxu0 0.0
        %873 = vmatpush1.msra.mxu0 0.0
        %874 = vmatprep.subr.mxu0 0.0
        %875 = vmatpush1.msra.mxu0 0.0
        %876 = vmatprep.subr.mxu0 0.0
        %877 = vmatpush1.msra.mxu0 0.0
        %878 = vmatprep.subr.mxu0 0.0
        %879 = vmatpush1.msra.mxu0 0.0
        %880 = vmatprep.subr.mxu0 0.0
        %881 = vmatpush1.msra.mxu0 0.0
        %882 = vmatprep.subr.mxu0 0.0
        %883 = vmatpush1.msra.mxu0 0.0
        %884 = vmatprep.subr.mxu0 0.0
        %885 = vmatpush1.msra.mxu0 0.0
        %886 = vmatprep.subr.mxu0 0.0
        %887 = vmatpush1.msra.mxu0 %v265
        %888 = vmatprep.subr.mxu0 0.0
        %889 = vmatpush2.msra.mxu0 0.0
        %890 = vmatprep.subr.mxu0 0.0
        %891 = vmatpush2.msra.mxu0 0.0
        %892 = vmatprep.subr.mxu0 0.0
        %893 = vmatpush2.msra.mxu0 0.0
        %894 = vmatprep.subr.mxu0 0.0
        %895 = vmatpush2.msra.mxu0 0.0
        %896 = vmatprep.subr.mxu0 0.0
        %897 = vmatpush2.msra.mxu0 0.0
        %898 = vmatprep.subr.mxu0 0.0
        %899 = vmatpush2.msra.mxu0 0.0
        %900 = vmatprep.subr.mxu0 0.0
        %901 = vmatpush2.msra.mxu0 0.0
        %902 = vmatprep.subr.mxu0 0.0
        %903 = vmatpush2.msra.mxu0 0.0
        %904 = vmatprep.subr.mxu0 0.0
        %905 = vmatpush2.msra.mxu0 0.0
        %906 = vmatprep.subr.mxu0 0.0
        %907 = vmatpush2.msra.mxu0 0.0
        %908 = vmatprep.subr.mxu0 0.0
        %909 = vmatpush2.msra.mxu0 0.0
        %910 = vmatprep.subr.mxu0 0.0
        %911 = vmatpush2.msra.mxu0 0.0
        %912 = vmatprep.subr.mxu0 0.0
        %913 = vmatpush2.msra.mxu0 0.0
        %914 = vmatprep.subr.mxu0 0.0
        %915 = vmatpush2.msra.mxu0 0.0
        %916 = vmatprep.subr.mxu0 0.0
        %917 = vmatpush2.msra.mxu0 0.0
        %918 = vmatprep.subr.mxu0 0.0
        %919 = vmatpush2.msra.mxu0 0.0
        %920 = vmatprep.mubr.f32.mxu0 0.0
        %921 = vmatmul.mubr.f32.gmra.mxu0 %v854
        %v922 = vpop.f32.mrf.mxu0
        %v923 = vadd.f32 0.0, %v922
        %v924 = vpop.f32.mrf.mxu0
        %925 = vdwg.mxu0
        %v926 = vsel %vm504, %v561, 0
        %928 = vmatprep.subr.mxu0 0.0
        %929 = vmatpush1.msra.mxu0 0.0
        %930 = vmatprep.subr.mxu0 0.0
        %931 = vmatpush1.msra.mxu0 0.0
        %932 = vmatprep.subr.mxu0 0.0
        %933 = vmatpush1.msra.mxu0 0.0
        %934 = vmatprep.subr.mxu0 0.0
        %935 = vmatpush1.msra.mxu0 0.0
        %936 = vmatprep.subr.mxu0 0.0
        %937 = vmatpush1.msra.mxu0 0.0
        %938 = vmatprep.subr.mxu0 0.0
        %939 = vmatpush1.msra.mxu0 0.0
        %940 = vmatprep.subr.mxu0 0.0
        %941 = vmatpush1.msra.mxu0 0.0
        %942 = vmatprep.subr.mxu0 0.0
        %943 = vmatpush1.msra.mxu0 0.0
        %944 = vmatprep.subr.mxu0 0.0
        %945 = vmatpush1.msra.mxu0 0.0
        %946 = vmatprep.subr.mxu0 0.0
        %947 = vmatpush1.msra.mxu0 0.0
        %948 = vmatprep.subr.mxu0 0.0
        %949 = vmatpush1.msra.mxu0 0.0
        %950 = vmatprep.subr.mxu0 0.0
        %951 = vmatpush1.msra.mxu0 0.0
        %952 = vmatprep.subr.mxu0 0.0
        %953 = vmatpush1.msra.mxu0 0.0
        %954 = vmatprep.subr.mxu0 0.0
        %955 = vmatpush1.msra.mxu0 0.0
        %956 = vmatprep.subr.mxu0 0.0
        %957 = vmatpush1.msra.mxu0 0.0
        %958 = vmatprep.subr.mxu0 0.0
        %959 = vmatpush1.msra.mxu0 %v266
        %960 = vmatprep.subr.mxu0 0.0
        %961 = vmatpush2.msra.mxu0 0.0
        %962 = vmatprep.subr.mxu0 0.0
        %963 = vmatpush2.msra.mxu0 0.0
        %964 = vmatprep.subr.mxu0 0.0
        %965 = vmatpush2.msra.mxu0 0.0
        %966 = vmatprep.subr.mxu0 0.0
        %967 = vmatpush2.msra.mxu0 0.0
        %968 = vmatprep.subr.mxu0 0.0
        %969 = vmatpush2.msra.mxu0 0.0
        %970 = vmatprep.subr.mxu0 0.0
        %971 = vmatpush2.msra.mxu0 0.0
        %972 = vmatprep.subr.mxu0 0.0
        %973 = vmatpush2.msra.mxu0 0.0
        %974 = vmatprep.subr.mxu0 0.0
        %975 = vmatpush2.msra.mxu0 0.0
        %976 = vmatprep.subr.mxu0 0.0
        %977 = vmatpush2.msra.mxu0 0.0
        %978 = vmatprep.subr.mxu0 0.0
        %979 = vmatpush2.msra.mxu0 0.0
        %980 = vmatprep.subr.mxu0 0.0
        %981 = vmatpush2.msra.mxu0 0.0
        %982 = vmatprep.subr.mxu0 0.0
        %983 = vmatpush2.msra.mxu0 0.0
        %984 = vmatprep.subr.mxu0 0.0
        %985 = vmatpush2.msra.mxu0 0.0
        %986 = vmatprep.subr.mxu0 0.0
        %987 = vmatpush2.msra.mxu0 0.0
        %988 = vmatprep.subr.mxu0 0.0
        %989 = vmatpush2.msra.mxu0 0.0
        %990 = vmatprep.subr.mxu0 0.0
        %991 = vmatpush2.msra.mxu0 0.0
        %992 = vmatprep.mubr.f32.mxu0 0.0
        %993 = vmatmul.mubr.f32.gmra.mxu0 %v926
        %v994 = vpop.f32.mrf.mxu0
        %v995 = vadd.f32 0.0, %v994
        %v996 = vpop.f32.mrf.mxu0
        %997 = vdwg.mxu0
        %v998 = vsel %vm504, %v563, 0
        %1000 = vmatprep.subr.mxu0 0.0
        %1001 = vmatpush1.msra.mxu0 0.0
        %1002 = vmatprep.subr.mxu0 0.0
        %1003 = vmatpush1.msra.mxu0 0.0
        %1004 = vmatprep.subr.mxu0 0.0
        %1005 = vmatpush1.msra.mxu0 0.0
        %1006 = vmatprep.subr.mxu0 0.0
        %1007 = vmatpush1.msra.mxu0 0.0
        %1008 = vmatprep.subr.mxu0 0.0
        %1009 = vmatpush1.msra.mxu0 0.0
        %1010 = vmatprep.subr.mxu0 0.0
        %1011 = vmatpush1.msra.mxu0 0.0
        %1012 = vmatprep.subr.mxu0 0.0
        %1013 = vmatpush1.msra.mxu0 0.0
        %1014 = vmatprep.subr.mxu0 0.0
        %1015 = vmatpush1.msra.mxu0 0.0
        %1016 = vmatprep.subr.mxu0 0.0
        %1017 = vmatpush1.msra.mxu0 0.0
        %1018 = vmatprep.subr.mxu0 0.0
        %1019 = vmatpush1.msra.mxu0 0.0
        %1020 = vmatprep.subr.mxu0 0.0
        %1021 = vmatpush1.msra.mxu0 0.0
        %1022 = vmatprep.subr.mxu0 0.0
        %1023 = vmatpush1.msra.mxu0 0.0
        %1024 = vmatprep.subr.mxu0 0.0
        %1025 = vmatpush1.msra.mxu0 0.0
        %1026 = vmatprep.subr.mxu0 0.0
        %1027 = vmatpush1.msra.mxu0 0.0
        %1028 = vmatprep.subr.mxu0 0.0
        %1029 = vmatpush1.msra.mxu0 0.0
        %1030 = vmatprep.subr.mxu0 0.0
        %1031 = vmatpush1.msra.mxu0 %v267
        %1032 = vmatprep.subr.mxu0 0.0
        %1033 = vmatpush2.msra.mxu0 0.0
        %1034 = vmatprep.subr.mxu0 0.0
        %1035 = vmatpush2.msra.mxu0 0.0
        %1036 = vmatprep.subr.mxu0 0.0
        %1037 = vmatpush2.msra.mxu0 0.0
        %1038 = vmatprep.subr.mxu0 0.0
        %1039 = vmatpush2.msra.mxu0 0.0
        %1040 = vmatprep.subr.mxu0 0.0
        %1041 = vmatpush2.msra.mxu0 0.0
        %1042 = vmatprep.subr.mxu0 0.0
        %1043 = vmatpush2.msra.mxu0 0.0
        %1044 = vmatprep.subr.mxu0 0.0
        %1045 = vmatpush2.msra.mxu0 0.0
        %1046 = vmatprep.subr.mxu0 0.0
        %1047 = vmatpush2.msra.mxu0 0.0
        %1048 = vmatprep.subr.mxu0 0.0
        %1049 = vmatpush2.msra.mxu0 0.0
        %1050 = vmatprep.subr.mxu0 0.0
        %1051 = vmatpush2.msra.mxu0 0.0
        %1052 = vmatprep.subr.mxu0 0.0
        %1053 = vmatpush2.msra.mxu0 0.0
        %1054 = vmatprep.subr.mxu0 0.0
        %1055 = vmatpush2.msra.mxu0 0.0
        %1056 = vmatprep.subr.mxu0 0.0
        %1057 = vmatpush2.msra.mxu0 0.0
        %1058 = vmatprep.subr.mxu0 0.0
        %1059 = vmatpush2.msra.mxu0 0.0
        %1060 = vmatprep.subr.mxu0 0.0
        %1061 = vmatpush2.msra.mxu0 0.0
        %1062 = vmatprep.subr.mxu0 0.0
        %1063 = vmatpush2.msra.mxu0 0.0
        %1064 = vmatprep.mubr.f32.mxu0 0.0
        %1065 = vmatmul.mubr.f32.gmra.mxu0 %v998
        %v1066 = vpop.f32.mrf.mxu0
        %v1067 = vadd.f32 0.0, %v1066
        %v1068 = vpop.f32.mrf.mxu0
        %1069 = vdwg.mxu0
        %v1070 = vsel %vm504, %v565, 0
        %1072 = vmatprep.subr.mxu0 0.0
        %1073 = vmatpush1.msra.mxu0 0.0
        %1074 = vmatprep.subr.mxu0 0.0
        %1075 = vmatpush1.msra.mxu0 0.0
        %1076 = vmatprep.subr.mxu0 0.0
        %1077 = vmatpush1.msra.mxu0 0.0
        %1078 = vmatprep.subr.mxu0 0.0
        %1079 = vmatpush1.msra.mxu0 0.0
        %1080 = vmatprep.subr.mxu0 0.0
        %1081 = vmatpush1.msra.mxu0 0.0
        %1082 = vmatprep.subr.mxu0 0.0
        %1083 = vmatpush1.msra.mxu0 0.0
        %1084 = vmatprep.subr.mxu0 0.0
        %1085 = vmatpush1.msra.mxu0 0.0
        %1086 = vmatprep.subr.mxu0 0.0
        %1087 = vmatpush1.msra.mxu0 0.0
        %1088 = vmatprep.subr.mxu0 0.0
        %1089 = vmatpush1.msra.mxu0 0.0
        %1090 = vmatprep.subr.mxu0 0.0
        %1091 = vmatpush1.msra.mxu0 0.0
        %1092 = vmatprep.subr.mxu0 0.0
        %1093 = vmatpush1.msra.mxu0 0.0
        %1094 = vmatprep.subr.mxu0 0.0
        %1095 = vmatpush1.msra.mxu0 0.0
        %1096 = vmatprep.subr.mxu0 0.0
        %1097 = vmatpush1.msra.mxu0 0.0
        %1098 = vmatprep.subr.mxu0 0.0
        %1099 = vmatpush1.msra.mxu0 0.0
        %1100 = vmatprep.subr.mxu0 0.0
        %1101 = vmatpush1.msra.mxu0 0.0
        %1102 = vmatprep.subr.mxu0 0.0
        %1103 = vmatpush1.msra.mxu0 %v268
        %1104 = vmatprep.subr.mxu0 0.0
        %1105 = vmatpush2.msra.mxu0 0.0
        %1106 = vmatprep.subr.mxu0 0.0
        %1107 = vmatpush2.msra.mxu0 0.0
        %1108 = vmatprep.subr.mxu0 0.0
        %1109 = vmatpush2.msra.mxu0 0.0
        %1110 = vmatprep.subr.mxu0 0.0
        %1111 = vmatpush2.msra.mxu0 0.0
        %1112 = vmatprep.subr.mxu0 0.0
        %1113 = vmatpush2.msra.mxu0 0.0
        %1114 = vmatprep.subr.mxu0 0.0
        %1115 = vmatpush2.msra.mxu0 0.0
        %1116 = vmatprep.subr.mxu0 0.0
        %1117 = vmatpush2.msra.mxu0 0.0
        %1118 = vmatprep.subr.mxu0 0.0
        %1119 = vmatpush2.msra.mxu0 0.0
        %1120 = vmatprep.subr.mxu0 0.0
        %1121 = vmatpush2.msra.mxu0 0.0
        %1122 = vmatprep.subr.mxu0 0.0
        %1123 = vmatpush2.msra.mxu0 0.0
        %1124 = vmatprep.subr.mxu0 0.0
        %1125 = vmatpush2.msra.mxu0 0.0
        %1126 = vmatprep.subr.mxu0 0.0
        %1127 = vmatpush2.msra.mxu0 0.0
        %1128 = vmatprep.subr.mxu0 0.0
        %1129 = vmatpush2.msra.mxu0 0.0
        %1130 = vmatprep.subr.mxu0 0.0
        %1131 = vmatpush2.msra.mxu0 0.0
        %1132 = vmatprep.subr.mxu0 0.0
        %1133 = vmatpush2.msra.mxu0 0.0
        %1134 = vmatprep.subr.mxu0 0.0
        %1135 = vmatpush2.msra.mxu0 0.0
        %1136 = vmatprep.mubr.f32.mxu0 0.0
        %1137 = vmatmul.mubr.f32.gmra.mxu0 %v1070
        %v1138 = vpop.f32.mrf.mxu0
        %v1139 = vadd.f32 0.0, %v1138
        %v1140 = vpop.f32.mrf.mxu0
        %1141 = vdwg.mxu0
        %v1150 = vrot.slane %v707, 7
        %v1151 = vsel %vm488, %v1150, %v635
        %v1152 = vrot.slane %v779, 6
        %v1153 = vsel %vm490, %v1152, %v1151
        %v1154 = vrot.slane %v851, 5
        %v1155 = vsel %vm492, %v1154, %v1153
        %v1156 = vrot.slane %v923, 4
        %v1157 = vsel %vm494, %v1156, %v1155
        %v1158 = vrot.slane %v995, 3
        %v1159 = vsel %vm496, %v1158, %v1157
        %v1160 = vrot.slane %v1067, 2
        %v1161 = vsel %vm498, %v1160, %v1159
        %v1162 = vrot.slane %v1139, 1
        %v1163 = vsel %vm500, %v1162, %v1161
        %v1165 = vsel %vm291, %v1163, 0.0
        %1166 = vadd.xlane.f32.xlu0 %v1165
        %v1167 = vpop.xlane.xlu0 %1166
        %v1168 = vmul.f32 %v1167, 0.03125
        %v1170 = vrot.slane %v1168, 1
        %v1171 = vrot.slane %v1168, 2
        %v1172 = vrot.slane %v1168, 3
        %v1173 = vrot.slane %v1168, 4
        %v1174 = vrot.slane %v1168, 5
        %v1175 = vrot.slane %v1168, 6
        %v1176 = vrot.slane %v1168, 7
        %v1185 = vsub.f32 %v635, %v1168
        %v1186 = vsub.f32 %v707, %v1170
        %v1187 = vsub.f32 %v779, %v1171
        %v1188 = vsub.f32 %v851, %v1172
        %v1189 = vsub.f32 %v923, %v1173
        %v1190 = vsub.f32 %v995, %v1174
        %v1191 = vsub.f32 %v1067, %v1175
        %v1192 = vsub.f32 %v1139, %v1176
        %v1193 = vmul.f32 %v1185, %v1185
        %v1194 = vmul.f32 %v1186, %v1186
        %v1195 = vmul.f32 %v1187, %v1187
        %v1196 = vmul.f32 %v1188, %v1188
        %v1197 = vmul.f32 %v1189, %v1189
        %v1198 = vmul.f32 %v1190, %v1190
        %v1199 = vmul.f32 %v1191, %v1191
        %v1200 = vmul.f32 %v1192, %v1192
        %v1209 = vrot.slane %v1194, 7
        %v1210 = vsel %vm488, %v1209, %v1193
        %v1211 = vrot.slane %v1195, 6
        %v1212 = vsel %vm490, %v1211, %v1210
        %v1213 = vrot.slane %v1196, 5
        %v1214 = vsel %vm492, %v1213, %v1212
        %v1215 = vrot.slane %v1197, 4
        %v1216 = vsel %vm494, %v1215, %v1214
        %v1217 = vrot.slane %v1198, 3
        %v1218 = vsel %vm496, %v1217, %v1216
        %v1219 = vrot.slane %v1199, 2
        %v1220 = vsel %vm498, %v1219, %v1218
        %v1221 = vrot.slane %v1200, 1
        %v1222 = vsel %vm500, %v1221, %v1220
        %v1224 = vsel %vm291, %v1222, 0.0
        %1225 = vadd.xlane.f32.xlu0 %v1224
        %v1226 = vpop.xlane.xlu0 %1225
        %v1227 = vmul.f32 %v1226, 0.032258064
        %v1228 = vrsqrt.pop %v1227
        %v1229 = vmul.f32 %v1227, %v1228
        %vm1230 = vcmp.eq.f32.partialorder %v1227, inf
        %v1231 = vsel %vm1230, %v1227, %v1229
        %vm1232 = vcmp.eq.f32.partialorder %v1227, 0.0
        %v1233 = vand.u32 %v1227, 2147483648
        %v1234 = vsel %vm1232, %v1233, %v1231
        %v1235 = vadd.f32 %v1234, 1e-06
        %v1236 = vrcp.pop %v1235
        %v1237 = vmul.f32 1.0, %v1236
        %v1238 = vld [vmem:[%s3] sm:$0x1]
        %v1240 = vrot.slane %v1237, 1
        %v1241 = vrot.slane %v1237, 2
        %v1242 = vrot.slane %v1237, 3
        %v1243 = vrot.slane %v1237, 4
        %v1244 = vrot.slane %v1237, 5
        %v1245 = vrot.slane %v1237, 6
        %v1246 = vrot.slane %v1237, 7
        %v1255 = vmul.f32 %v1185, %v1237
        %v1256 = vmul.f32 %v1186, %v1240
        %v1257 = vmul.f32 %v1187, %v1241
        %v1258 = vmul.f32 %v1188, %v1242
        %v1259 = vmul.f32 %v1189, %v1243
        %v1260 = vmul.f32 %v1190, %v1244
        %v1261 = vmul.f32 %v1191, %v1245
        %v1262 = vmul.f32 %v1192, %v1246
        %v1264 = vlaneseq
        %v1265 = vshrl.u32 %v1264, 7
        %v1266 = vsub.s32 0, %v1265
        %v1267 = vrot.slane %v1238, %v1266
        %v1277 = vrot.slane %v1256, 7
        %v1278 = vsel %vm488, %v1277, %v1255
        %v1279 = vrot.slane %v1257, 6
        %v1280 = vsel %vm490, %v1279, %v1278
        %v1281 = vrot.slane %v1258, 5
        %v1282 = vsel %vm492, %v1281, %v1280
        %v1283 = vrot.slane %v1259, 4
        %v1284 = vsel %vm494, %v1283, %v1282
        %v1285 = vrot.slane %v1260, 3
        %v1286 = vsel %vm496, %v1285, %v1284
        %v1287 = vrot.slane %v1261, 2
        %v1288 = vsel %vm498, %v1287, %v1286
        %v1289 = vrot.slane %v1262, 1
        %v1290 = vsel %vm500, %v1289, %v1288
        %v1292 = vmul.f32 %v1267, %v1290
        %v1293 = vld [vmem:[%s4] sm:$0x1]
        %v1295 = vlaneseq
        %v1296 = vshrl.u32 %v1295, 7
        %v1297 = vsub.s32 0, %v1296
        %v1298 = vrot.slane %v1293, %v1297
        %v1300 = vadd.f32 %v1292, %v1298
        %1301 = vst.msk [vmem:[%s255] sm:$0xff] %vm291, %v1300
        %s1302 = sand.u32 %s145, 1
        %s1303 = scalar_lea.sflag [#allocation4], %s1302
        %s1304 = sand.u32 %s145, 1
        %s1305 = smul.addr %s1304, 8
        %s1306 = scalar_lea.vmem [#allocation5], %s1305
        // Predicated region
        $region45: #{tpu_custom_call.1} parent=39 // pred_check
          %p1307 = pneg %p155
        $region46: #{tpu_custom_call.1} parent=39 // pred_check_branch
          %1309 = sbr.rel (%p1307) target = $region48
        $region47: #{tpu_custom_call.1} parent=39 // pred_region
          %s1311 = ssub.s32 128, 128
          %1312 = vsyncadd %s1303, %s1311
          %s1313 = smul.addr %s22, 128
          %s1314 = scalar_lea.hbm %s5, %s1313
          %s1316 = sshll.u32 %s1306, 4
          %s1317 = int_to_ptr.vmem [resolvable:$true] %s1316
          %1319 = dma.vmem_to_hbm [thread:$0]  %s1317, 128, %s1314, %s1303
        $region48: #{tpu_custom_call.1} parent=39 // pred_fallthru
          _
      $region40: #{tpu_custom_call.1} parent=5 // pred_fallthru
        _
      %p1320 = scmp.le.s32.totalorder 2, %s17
      // Predicated region
      $region49: #{tpu_custom_call.1} parent=5 // pred_check
        %p1321 = pneg %p1320
      $region50: #{tpu_custom_call.1} parent=5 // pred_check_branch
        %1323 = sbr.rel (%p1321) target = $region52
      $region51: #{tpu_custom_call.1} parent=5 // pred_region
        %s1324 = ssub.s32 %s17, 2
        // Predicated region
        $region53: #{tpu_custom_call.1} parent=51 // pred_check
          %p1325 = pneg %p161
        $region54: #{tpu_custom_call.1} parent=51 // pred_check_branch
          %1327 = sbr.rel (%p1325) target = $region56
        $region55: #{tpu_custom_call.1} parent=51 // pred_region
          %s1328 = sand.u32 %s146, 1
          %s1329 = scalar_lea.sflag [#allocation4], %s1328
          %s1330 = sand.u32 %s146, 1
          %s1331 = smul.addr %s1330, 8
          %s1332 = scalar_lea.vmem [#allocation5], %s1331
          %1333 = dma.done %s1329, 128
        $region56: #{tpu_custom_call.1} parent=51 // pred_fallthru
          _
      $region52: #{tpu_custom_call.1} parent=5 // pred_fallthru
        _
    $region6: #{tpu_custom_call.1} parent=1 // loop_footer
      %s21 = sadd.s32 1, %s17
    $region7: #{tpu_custom_call.1} parent=1 // loop_footer_branch
      %16 = sbr.rel target = $region3
    $region8: #{tpu_custom_call.1} parent=1 // loop_exit
      _
    %1334 = vsyncpa [#allocation3], 1
    %s1335 = scalar_lea.sflag [#allocation3], 1
    %1336 = vsyncpa %s1335, 1
    %1337 = vsyncpa [#allocation4], 1
    %s1338 = scalar_lea.sflag [#allocation4], 1
    %1339 = vsyncpa %s1338, 1

</llo_original>
